<compile_context>
chip_gen: v7x
topology: tpu7x:2x2x1
jax: 0.10.0
libtpu: 0.0.40
codegen_flags: <defaults>
</compile_context>

<pallas_src>
import jax
import jax.numpy as jnp
from jax.experimental import pallas as pl
from jax.experimental.pallas import tpu as pltpu


def _round_up(x, m):
    return (x + m - 1) // m * m


def _pick_batch_tile(B):
    """Per-grid-step overhead (~0.35 us) dominates this kernel, so prefer large
    batch tiles: 256-multiples (fill the 256-wide MXU pass on v6e/v7x), capped
    at 1024 and at ~half the padded batch so the grid has >= 2 steps for the
    two v7x TensorCores.  Small batches get a single minimal 8-aligned tile."""
    B8 = _round_up(max(B, 1), 8)
    if B8 <= 256:
        return B8
    half = _round_up(pl.cdiv(B8, 2), 256)
    return min(1024, half)


def dtn_kernel(logT_ref, len_ref, wT_ref, bias_ref, out_ref):
    """One batch tile of the fused DTN forward (batch-last / transposed layout).

    logT_ref : (S, TB)  int32    item ids, sequence-major (batch along lanes)
    len_ref  : (1, TB)  int32    per-sample valid sequence length
    wT_ref   : (K, V)   float32  fused table transposed: (emb_table @ W)^T
    bias_ref : (K, 1)   float32  linear bias as a column
    out_ref  : (K, TB)  float32  trait^T tile
    """
    S, TB = logT_ref.shape
    V = wT_ref.shape[1]
    lens = len_ref[...]                                        # (1, TB) int32

    # counts_t[v, b] = #{ s < len[b] : log[b, s] == v }.
    # Sequence-major layout: each step's id row is a (1, TB) sublane (stride-0)
    # broadcast against the vocab iota -- pure VPU work, no per-step cross-lane
    # (XLU) broadcast -- and the loop stays bounded-code-size via fori_loop.
    vocab = jax.lax.broadcasted_iota(jnp.int32, (V, TB), 0)    # hoisted out of the loop

    def count_step(s, acc):
        row = logT_ref[pl.ds(s, 1), :]                         # (1, TB) one sequence step
        row = jnp.where(s < lens, row, -1)                     # invalid slots never match
        return acc + (row == vocab).astype(jnp.float32)

    counts_t = jax.lax.fori_loop(0, S, count_step,
                                 jnp.zeros((V, TB), jnp.float32),
                                 unroll=True)

    # Masked mean: fold the EXACT 1/len into the tiny (V, TB) counts operand
    # (V*TB multiplies < TB*K), then a single plain NN matmul on the MXU.
    inv_len = 1.0 / lens.astype(jnp.float32)                   # exact; ample VPU slack here
    scaled = counts_t * inv_len                                # (V, TB)

    out_ref[...] = jax.lax.dot_general(
        wT_ref[...], scaled,
        dimension_numbers=(((1,), (0,)), ((), ())),            # (K,V) x (V,TB) -> (K,TB)
        preferred_element_type=jnp.float32,
    ) + bias_ref[...]


def make_dtn_params(emb_table, w, b):
    """One-time model preparation: fold Embedding @ Linear into an effective
    (K, V) table + (K, 1) bias column.  Compute once per model and reuse across
    all forward calls (this matmul must NOT run on every inference)."""
    w_eff = jnp.dot(jnp.asarray(emb_table, jnp.float32),
                    jnp.asarray(w, jnp.float32),
                    preferred_element_type=jnp.float32)        # (V, K)
    w_eff_t = w_eff.T                                          # (K, V)  matmul-LHS layout
    bias_col = jnp.asarray(b, jnp.float32).reshape(-1, 1)      # (K, 1)
    # Optional (v6e/v7x, large V only): cast w_eff_t to bf16 to halve the
    # resident table and double MXU throughput; keep f32 accumulation.
    return w_eff_t, bias_col


@jax.jit
def dtn_forward(log, mask, w_eff_t, bias_col):
    """Fused DTN forward.  log: (B, S) int ids; mask: (B,) valid lengths."""
    B, S = log.shape
    K, V = w_eff_t.shape

    TB = _pick_batch_tile(B)
    B_pad = _round_up(B, TB)

    # Sequence-major ids + row of lengths.  O(B*S) layout plumbing, negligible
    # next to the kernel's own HBM traffic (and fused by XLA under jit).
    logT = jnp.pad(jnp.asarray(log, jnp.int32).T, ((0, 0), (0, B_pad - B)))
    lens = jnp.pad(jnp.asarray(mask, jnp.int32).reshape(1, B),
                   ((0, 0), (0, B_pad - B)), constant_values=1)  # avoid 0-div in pad cols

    grid = (B_pad // TB,)
    out_t = pl.pallas_call(
        dtn_kernel,
        out_shape=jax.ShapeDtypeStruct((K, B_pad), jnp.float32),
        grid_spec=pltpu.PrefetchScalarGridSpec(
            num_scalar_prefetch=0,
            grid=grid,
            in_specs=[
                pl.BlockSpec((S, TB), lambda i: (0, i)),   # ids, batch-tiled along lanes
                pl.BlockSpec((1, TB), lambda i: (0, i)),   # lengths
                # Grid-invariant blocks (constant index_map) -> VMEM-resident
                # across all grid steps.  At realistic vocab sizes these could
                # additionally be single-buffered (pipeline_mode=pl.Buffered(1))
                # to reclaim the redundant second buffer.
                pl.BlockSpec((K, V), lambda i: (0, 0)),    # fused table
                pl.BlockSpec((K, 1), lambda i: (0, 0)),    # bias column
            ],
            out_specs=pl.BlockSpec((K, TB), lambda i: (0, i)),
        ),
        compiler_params=pltpu.CompilerParams(
            # Batch tiles are independent -> shard the grid across both v7x
            # TensorCores; harmless no-op on single-core v5e/v6e.
            dimension_semantics=("parallel",),
            vmem_limit_bytes=32 * 1024 * 1024,
        ),
    )(logT, lens, w_eff_t, bias_col)

    # trait^T -> trait.  O(B*K) transpose; the kernel itself keeps its output
    # lane-dense (lanes = batch tile, >= 256 at scale).
    return out_t[:, :B].T


def dtn_reference(log, mask, emb_table, w, b):
    """Pure-JAX reference mirroring the PyTorch module."""
    emb = emb_table[log]                                  # (B, S, D)
    fea = emb @ w + b                                     # (B, S, K)
    B, S, _K = fea.shape
    valid = (jnp.arange(S)[None, :] < mask[:, None]).astype(jnp.float32)
    summed = jnp.sum(fea * valid[:, :, None], axis=1)
    return summed / mask.astype(jnp.float32)[:, None]


if __name__ == "__main__":
    # Small synthetic configuration consistent with the module.
    input_dim = 20      # vocabulary size (item ids)
    know_dim = 32       # number of knowledge concepts
    fea_dim = 64        # fixed in the module
    B, S = 2, 8         # batch, sequence length

    key = jax.random.PRNGKey(0)
    k_log, k_emb, k_w, k_b = jax.random.split(key, 4)

    # Deterministic parameter init (mimics torch defaults: Embedding ~ N(0,1),
    # Linear ~ U(-1/sqrt(fan_in), 1/sqrt(fan_in))).
    emb_table = jax.random.normal(k_emb, (input_dim, fea_dim), dtype=jnp.float32)
    bound = 1.0 / (fea_dim ** 0.5)
    w = jax.random.uniform(k_w, (fea_dim, know_dim), dtype=jnp.float32,
                           minval=-bound, maxval=bound)
    b = jax.random.uniform(k_b, (know_dim,), dtype=jnp.float32,
                           minval=-bound, maxval=bound)

    # Inputs: item-id log (B, S) and per-sample sequence lengths (B,).
    log = jax.random.randint(k_log, (B, S), 0, input_dim, dtype=jnp.int32)
    mask = jnp.array([5, 8], dtype=jnp.int32)

    # One-time model prep (hoisted out of the per-call path), then the kernel.
    w_eff_t, bias_col = make_dtn_params(emb_table, w, b)
    trait = dtn_forward(log, mask, w_eff_t, bias_col)
    jax.block_until_ready(trait)

    ref = dtn_reference(log, mask, emb_table, w, b)
    assert trait.shape == (B, know_dim)
    # Exact reciprocal + f32 accumulation everywhere -> tight tolerance.
    assert jnp.allclose(trait, ref, atol=1e-4, rtol=1e-4), (
        f"max abs err = {jnp.max(jnp.abs(trait - ref))}")

    print("KERNEL_OK")
</pallas_src>

<mosaic_0001>
module attributes {stable_mosaic.version = 11 : i64} {
  func.func @dtn_kernel(%arg0: i32, %arg1: memref<8x8xi32, #tpu.memory_space<vmem>>, %arg2: memref<1x8xi32, #tpu.memory_space<vmem>>, %arg3: memref<32x20xf32, #tpu.memory_space<vmem>>, %arg4: memref<32x1xf32, #tpu.memory_space<vmem>>, %arg5: memref<32x8xf32, #tpu.memory_space<vmem>>) attributes {dimension_semantics = [#tpu.dimension_semantics<parallel>], iteration_bounds = array<i64: 1>, scalar_prefetch = 0 : i64, scratch_operands = 0 : i64, tpu.core_type = #tpu.core_type<tc>, window_params = [{transform_indices = @transform_0, window_bounds = array<i64: 8, 8>}, {transform_indices = @transform_1, window_bounds = array<i64: 1, 8>}, {pipeline_mode = #tpu.pipeline_mode<synchronous>, transform_indices = @transform_2, window_bounds = array<i64: 32, 20>}, {pipeline_mode = #tpu.pipeline_mode<synchronous>, transform_indices = @transform_3, window_bounds = array<i64: 32, 1>}, {transform_indices = @transform_4, window_bounds = array<i64: 32, 8>}]} {
    %c0 = arith.constant 0 : index
    %c0_0 = arith.constant 0 : index
    %0 = vector.load %arg2[%c0, %c0_0] : memref<1x8xi32, #tpu.memory_space<vmem>>, vector<1x8xi32>
    %1 = tpu.iota {dimensions = array<i32: 0>} : vector<20x8xi32>
    %cst = arith.constant 0.000000e+00 : f32
    %2 = vector.broadcast %cst : f32 to vector<20x8xf32>
    %c0_i32 = arith.constant 0 : i32
    %3 = arith.index_cast %c0_i32 : i32 to index
    %c0_1 = arith.constant 0 : index
    %4 = vector.load %arg1[%3, %c0_1] : memref<8x8xi32, #tpu.memory_space<vmem>>, vector<1x8xi32>
    %5 = vector.broadcast %c0_i32 : i32 to vector<1x8xi32>
    %6 = arith.cmpi slt, %5, %0 : vector<1x8xi32>
    %c-1_i32 = arith.constant -1 : i32
    %7 = vector.broadcast %c-1_i32 : i32 to vector<1x8xi32>
    %8 = arith.select %6, %4, %7 : vector<1x8xi1>, vector<1x8xi32>
    %9 = vector.broadcast %8 : vector<1x8xi32> to vector<20x8xi32>
    %10 = arith.cmpi eq, %9, %1 : vector<20x8xi32>
    %11 = arith.extui %10 : vector<20x8xi1> to vector<20x8xi32>
    %12 = arith.sitofp %11 : vector<20x8xi32> to vector<20x8xf32>
    %13 = arith.addf %2, %12 : vector<20x8xf32>
    %c1_i32 = arith.constant 1 : i32
    %14 = arith.index_cast %c1_i32 : i32 to index
    %c0_2 = arith.constant 0 : index
    %15 = vector.load %arg1[%14, %c0_2] : memref<8x8xi32, #tpu.memory_space<vmem>>, vector<1x8xi32>
    %16 = vector.broadcast %c1_i32 : i32 to vector<1x8xi32>
    %17 = arith.cmpi slt, %16, %0 : vector<1x8xi32>
    %c-1_i32_3 = arith.constant -1 : i32
    %18 = vector.broadcast %c-1_i32_3 : i32 to vector<1x8xi32>
    %19 = arith.select %17, %15, %18 : vector<1x8xi1>, vector<1x8xi32>
    %20 = vector.broadcast %19 : vector<1x8xi32> to vector<20x8xi32>
    %21 = arith.cmpi eq, %20, %1 : vector<20x8xi32>
    %22 = arith.extui %21 : vector<20x8xi1> to vector<20x8xi32>
    %23 = arith.sitofp %22 : vector<20x8xi32> to vector<20x8xf32>
    %24 = arith.addf %13, %23 : vector<20x8xf32>
    %c2_i32 = arith.constant 2 : i32
    %25 = arith.index_cast %c2_i32 : i32 to index
    %c0_4 = arith.constant 0 : index
    %26 = vector.load %arg1[%25, %c0_4] : memref<8x8xi32, #tpu.memory_space<vmem>>, vector<1x8xi32>
    %27 = vector.broadcast %c2_i32 : i32 to vector<1x8xi32>
    %28 = arith.cmpi slt, %27, %0 : vector<1x8xi32>
    %c-1_i32_5 = arith.constant -1 : i32
    %29 = vector.broadcast %c-1_i32_5 : i32 to vector<1x8xi32>
    %30 = arith.select %28, %26, %29 : vector<1x8xi1>, vector<1x8xi32>
    %31 = vector.broadcast %30 : vector<1x8xi32> to vector<20x8xi32>
    %32 = arith.cmpi eq, %31, %1 : vector<20x8xi32>
    %33 = arith.extui %32 : vector<20x8xi1> to vector<20x8xi32>
    %34 = arith.sitofp %33 : vector<20x8xi32> to vector<20x8xf32>
    %35 = arith.addf %24, %34 : vector<20x8xf32>
    %c3_i32 = arith.constant 3 : i32
    %36 = arith.index_cast %c3_i32 : i32 to index
    %c0_6 = arith.constant 0 : index
    %37 = vector.load %arg1[%36, %c0_6] : memref<8x8xi32, #tpu.memory_space<vmem>>, vector<1x8xi32>
    %38 = vector.broadcast %c3_i32 : i32 to vector<1x8xi32>
    %39 = arith.cmpi slt, %38, %0 : vector<1x8xi32>
    %c-1_i32_7 = arith.constant -1 : i32
    %40 = vector.broadcast %c-1_i32_7 : i32 to vector<1x8xi32>
    %41 = arith.select %39, %37, %40 : vector<1x8xi1>, vector<1x8xi32>
    %42 = vector.broadcast %41 : vector<1x8xi32> to vector<20x8xi32>
    %43 = arith.cmpi eq, %42, %1 : vector<20x8xi32>
    %44 = arith.extui %43 : vector<20x8xi1> to vector<20x8xi32>
    %45 = arith.sitofp %44 : vector<20x8xi32> to vector<20x8xf32>
    %46 = arith.addf %35, %45 : vector<20x8xf32>
    %c4_i32 = arith.constant 4 : i32
    %47 = arith.index_cast %c4_i32 : i32 to index
    %c0_8 = arith.constant 0 : index
    %48 = vector.load %arg1[%47, %c0_8] : memref<8x8xi32, #tpu.memory_space<vmem>>, vector<1x8xi32>
    %49 = vector.broadcast %c4_i32 : i32 to vector<1x8xi32>
    %50 = arith.cmpi slt, %49, %0 : vector<1x8xi32>
    %c-1_i32_9 = arith.constant -1 : i32
    %51 = vector.broadcast %c-1_i32_9 : i32 to vector<1x8xi32>
    %52 = arith.select %50, %48, %51 : vector<1x8xi1>, vector<1x8xi32>
    %53 = vector.broadcast %52 : vector<1x8xi32> to vector<20x8xi32>
    %54 = arith.cmpi eq, %53, %1 : vector<20x8xi32>
    %55 = arith.extui %54 : vector<20x8xi1> to vector<20x8xi32>
    %56 = arith.sitofp %55 : vector<20x8xi32> to vector<20x8xf32>
    %57 = arith.addf %46, %56 : vector<20x8xf32>
    %c5_i32 = arith.constant 5 : i32
    %58 = arith.index_cast %c5_i32 : i32 to index
    %c0_10 = arith.constant 0 : index
    %59 = vector.load %arg1[%58, %c0_10] : memref<8x8xi32, #tpu.memory_space<vmem>>, vector<1x8xi32>
    %60 = vector.broadcast %c5_i32 : i32 to vector<1x8xi32>
    %61 = arith.cmpi slt, %60, %0 : vector<1x8xi32>
    %c-1_i32_11 = arith.constant -1 : i32
    %62 = vector.broadcast %c-1_i32_11 : i32 to vector<1x8xi32>
    %63 = arith.select %61, %59, %62 : vector<1x8xi1>, vector<1x8xi32>
    %64 = vector.broadcast %63 : vector<1x8xi32> to vector<20x8xi32>
    %65 = arith.cmpi eq, %64, %1 : vector<20x8xi32>
    %66 = arith.extui %65 : vector<20x8xi1> to vector<20x8xi32>
    %67 = arith.sitofp %66 : vector<20x8xi32> to vector<20x8xf32>
    %68 = arith.addf %57, %67 : vector<20x8xf32>
    %c6_i32 = arith.constant 6 : i32
    %69 = arith.index_cast %c6_i32 : i32 to index
    %c0_12 = arith.constant 0 : index
    %70 = vector.load %arg1[%69, %c0_12] : memref<8x8xi32, #tpu.memory_space<vmem>>, vector<1x8xi32>
    %71 = vector.broadcast %c6_i32 : i32 to vector<1x8xi32>
    %72 = arith.cmpi slt, %71, %0 : vector<1x8xi32>
    %c-1_i32_13 = arith.constant -1 : i32
    %73 = vector.broadcast %c-1_i32_13 : i32 to vector<1x8xi32>
    %74 = arith.select %72, %70, %73 : vector<1x8xi1>, vector<1x8xi32>
    %75 = vector.broadcast %74 : vector<1x8xi32> to vector<20x8xi32>
    %76 = arith.cmpi eq, %75, %1 : vector<20x8xi32>
    %77 = arith.extui %76 : vector<20x8xi1> to vector<20x8xi32>
    %78 = arith.sitofp %77 : vector<20x8xi32> to vector<20x8xf32>
    %79 = arith.addf %68, %78 : vector<20x8xf32>
    %c7_i32 = arith.constant 7 : i32
    %80 = arith.index_cast %c7_i32 : i32 to index
    %c0_14 = arith.constant 0 : index
    %81 = vector.load %arg1[%80, %c0_14] : memref<8x8xi32, #tpu.memory_space<vmem>>, vector<1x8xi32>
    %82 = vector.broadcast %c7_i32 : i32 to vector<1x8xi32>
    %83 = arith.cmpi slt, %82, %0 : vector<1x8xi32>
    %c-1_i32_15 = arith.constant -1 : i32
    %84 = vector.broadcast %c-1_i32_15 : i32 to vector<1x8xi32>
    %85 = arith.select %83, %81, %84 : vector<1x8xi1>, vector<1x8xi32>
    %86 = vector.broadcast %85 : vector<1x8xi32> to vector<20x8xi32>
    %87 = arith.cmpi eq, %86, %1 : vector<20x8xi32>
    %88 = arith.extui %87 : vector<20x8xi1> to vector<20x8xi32>
    %89 = arith.sitofp %88 : vector<20x8xi32> to vector<20x8xf32>
    %90 = arith.addf %79, %89 : vector<20x8xf32>
    %c8_i32 = arith.constant 8 : i32
    %91 = arith.sitofp %0 : vector<1x8xi32> to vector<1x8xf32>
    %cst_16 = arith.constant 1.000000e+00 : f32
    %92 = vector.broadcast %cst_16 : f32 to vector<1x8xf32>
    %93 = arith.divf %92, %91 : vector<1x8xf32>
    %94 = vector.broadcast %93 : vector<1x8xf32> to vector<20x8xf32>
    %95 = arith.mulf %90, %94 : vector<20x8xf32>
    %c0_17 = arith.constant 0 : index
    %c0_18 = arith.constant 0 : index
    %96 = vector.load %arg3[%c0_17, %c0_18] : memref<32x20xf32, #tpu.memory_space<vmem>>, vector<32x20xf32>
    %cst_19 = arith.constant dense<0.000000e+00> : vector<32x8xf32>
    %97 = tpu.matmul %96, %95, %cst_19 {dimension_numbers = #tpu.dot_dimension_numbers<[1], [0], [0], [1], [0, 0, 1, 1], [], []>} : vector<32x20xf32>, vector<20x8xf32>, vector<32x8xf32> -> vector<32x8xf32>
    %c0_20 = arith.constant 0 : index
    %c0_21 = arith.constant 0 : index
    %98 = vector.load %arg4[%c0_20, %c0_21] : memref<32x1xf32, #tpu.memory_space<vmem>>, vector<32x1xf32>
    %99 = vector.broadcast %98 : vector<32x1xf32> to vector<32x8xf32>
    %100 = arith.addf %97, %99 : vector<32x8xf32>
    %c0_22 = arith.constant 0 : index
    %c0_23 = arith.constant 0 : index
    %101 = vector.load %arg5[%c0_22, %c0_23] : memref<32x8xf32, #tpu.memory_space<vmem>>, vector<32x8xf32>
    tpu.vector_store %arg5[%c0_22, %c0_23], %100 {strides = array<i32>} : memref<32x8xf32, #tpu.memory_space<vmem>>, vector<32x8xf32>,
    return
  }
  func.func @transform_0(%arg0: i32) -> (i32, i32) {
    %c0_i32 = arith.constant 0 : i32
    %c0_i32_0 = arith.constant 0 : i32
    return %c0_i32, %arg0 : i32, i32
  }
  func.func @transform_1(%arg0: i32) -> (i32, i32) {
    %c0_i32 = arith.constant 0 : i32
    %c0_i32_0 = arith.constant 0 : i32
    return %c0_i32, %arg0 : i32, i32
  }
  func.func @transform_2(%arg0: i32) -> (i32, i32) {
    %c0_i32 = arith.constant 0 : i32
    %c0_i32_0 = arith.constant 0 : i32
    %c0_i32_1 = arith.constant 0 : i32
    return %c0_i32, %c0_i32_0 : i32, i32
  }
  func.func @transform_3(%arg0: i32) -> (i32, i32) {
    %c0_i32 = arith.constant 0 : i32
    %c0_i32_0 = arith.constant 0 : i32
    %c0_i32_1 = arith.constant 0 : i32
    return %c0_i32, %c0_i32_0 : i32, i32
  }
  func.func @transform_4(%arg0: i32) -> (i32, i32) {
    %c0_i32 = arith.constant 0 : i32
    %c0_i32_0 = arith.constant 0 : i32
    return %c0_i32, %arg0 : i32, i32
  }
}

</mosaic_0001>

<llo_original>
// kernel: dtn_forward.1
$region0: #{dtn_forward.1}
  #allocation0 [shape = 'u32[]', space=smem, size = 0x4, offset = 0x4, fixed_abs, tag = 'smem constant byte address 0x4 - core index']
  #allocation1 [shape = 'u32[144,128]{1,0:T(1,128)}', space=vmem, size = 0x12000, scoped, tag = 'internal scratch']
  %s0 = inlined_call_operand.vmem [shape: s32[8,8], index: 0, kind: input, shape index: {}]
  %s1 = inlined_call_operand.vmem [shape: s32[1,8], index: 1, kind: input, shape index: {}]
  %s2 = inlined_call_operand.vmem [shape: f32[32,20], index: 2, kind: input, shape index: {}]
  %s3 = inlined_call_operand.vmem [shape: f32[32,1], index: 3, kind: input, shape index: {}]
  %s4 = inlined_call_operand.vmem [shape: f32[32,8], index: 4, kind: output, shape index: {}]
  %s5 = sld [smem:[#allocation0]]
  $region26: #{dtn_forward.1} parent=0
    _
  %s7 = ssub.s32 1, %s5
  %s8 = scalar_select 0, %s7, %s5
  // Predicated region
  $region2: #{dtn_forward.1} parent=0 // pred_check
    _
  $region3: #{dtn_forward.1} parent=0 // pred_check_branch
    %10 = sbr.rel (0) target = $region5
  $region4: #{dtn_forward.1} parent=0 // pred_region
    _
  $region5: #{dtn_forward.1} parent=0 // pred_fallthru
    _
  // Predicated region
  $region6: #{dtn_forward.1} parent=0 // pred_check
    _
  $region7: #{dtn_forward.1} parent=0 // pred_check_branch
    %12 = sbr.rel (0) target = $region9
  $region8: #{dtn_forward.1} parent=0 // pred_region
    _
  $region9: #{dtn_forward.1} parent=0 // pred_fallthru
    _
  // Predicated region
  $region10: #{dtn_forward.1} parent=0 // pred_check
    _
  $region11: #{dtn_forward.1} parent=0 // pred_check_branch
    %14 = sbr.rel (0) target = $region13
  $region12: #{dtn_forward.1} parent=0 // pred_region
    _
  $region13: #{dtn_forward.1} parent=0 // pred_fallthru
    _
  // Predicated region
  $region14: #{dtn_forward.1} parent=0 // pred_check
    _
  $region15: #{dtn_forward.1} parent=0 // pred_check_branch
    %16 = sbr.rel (0) target = $region17
  $region16: #{dtn_forward.1} parent=0 // pred_region
    _
  $region17: #{dtn_forward.1} parent=0 // pred_fallthru
    _
  %v17 = vld [vmem:[%s1] sm:$0x1]
  %v18 = vlaneseq
  %v19 = vshrl.u32 %v18, 7
  %v20 = vadd.s32 %v19, 8
  %v21 = vadd.s32 %v19, 16
  %v22 = vld [vmem:[%s0] sm:$0x1]
  %vm23 = vcmp.gt.s32.totalorder %v17, 0
  %v24 = vsel %vm23, %v22, 4294967295
  %v25 = vlaneseq
  %v26 = vshrl.u32 %v25, 7
  %v27 = vsub.s32 0, %v26
  %v28 = vrot.slane %v24, %v27
  %vm29 = vcmp.eq.s32.totalorder %v28, %v19
  %vm30 = vcmp.eq.s32.totalorder %v28, %v20
  %vm31 = vcmp.eq.s32.totalorder %v28, %v21
  %v32 = vsel %vm29, 1, 0
  %v33 = vsel %vm30, 1, 0
  %v34 = vsel %vm31, 1, 0
  %v35 = vcvt.s32.f32 %v32
  %v36 = vcvt.s32.f32 %v33
  %v37 = vcvt.s32.f32 %v34
  %v38 = vadd.f32 %v35, 0.0
  %v39 = vadd.f32 %v36, 0.0
  %v40 = vadd.f32 %v37, 0.0
  %v41 = vld [vmem:[%s0 + $0x1] sm:$0x1]
  %vm42 = vcmp.gt.s32.totalorder %v17, 1
  %v43 = vsel %vm42, %v41, 4294967295
  %v44 = vlaneseq
  %v45 = vshrl.u32 %v44, 7
  %v46 = vsub.s32 0, %v45
  %v47 = vrot.slane %v43, %v46
  %vm48 = vcmp.eq.s32.totalorder %v47, %v19
  %vm49 = vcmp.eq.s32.totalorder %v47, %v20
  %vm50 = vcmp.eq.s32.totalorder %v47, %v21
  %v51 = vsel %vm48, 1, 0
  %v52 = vsel %vm49, 1, 0
  %v53 = vsel %vm50, 1, 0
  %v54 = vcvt.s32.f32 %v51
  %v55 = vcvt.s32.f32 %v52
  %v56 = vcvt.s32.f32 %v53
  %v57 = vadd.f32 %v38, %v54
  %v58 = vadd.f32 %v39, %v55
  %v59 = vadd.f32 %v40, %v56
  %v60 = vld [vmem:[%s0 + $0x2] sm:$0x1]
  %vm61 = vcmp.gt.s32.totalorder %v17, 2
  %v62 = vsel %vm61, %v60, 4294967295
  %v63 = vlaneseq
  %v64 = vshrl.u32 %v63, 7
  %v65 = vsub.s32 0, %v64
  %v66 = vrot.slane %v62, %v65
  %vm67 = vcmp.eq.s32.totalorder %v66, %v19
  %vm68 = vcmp.eq.s32.totalorder %v66, %v20
  %vm69 = vcmp.eq.s32.totalorder %v66, %v21
  %v70 = vsel %vm67, 1, 0
  %v71 = vsel %vm68, 1, 0
  %v72 = vsel %vm69, 1, 0
  %v73 = vcvt.s32.f32 %v70
  %v74 = vcvt.s32.f32 %v71
  %v75 = vcvt.s32.f32 %v72
  %v76 = vadd.f32 %v57, %v73
  %v77 = vadd.f32 %v58, %v74
  %v78 = vadd.f32 %v59, %v75
  %v79 = vld [vmem:[%s0 + $0x3] sm:$0x1]
  %vm80 = vcmp.gt.s32.totalorder %v17, 3
  %v81 = vsel %vm80, %v79, 4294967295
  %v82 = vlaneseq
  %v83 = vshrl.u32 %v82, 7
  %v84 = vsub.s32 0, %v83
  %v85 = vrot.slane %v81, %v84
  %vm86 = vcmp.eq.s32.totalorder %v85, %v19
  %vm87 = vcmp.eq.s32.totalorder %v85, %v20
  %vm88 = vcmp.eq.s32.totalorder %v85, %v21
  %v89 = vsel %vm86, 1, 0
  %v90 = vsel %vm87, 1, 0
  %v91 = vsel %vm88, 1, 0
  %v92 = vcvt.s32.f32 %v89
  %v93 = vcvt.s32.f32 %v90
  %v94 = vcvt.s32.f32 %v91
  %v95 = vadd.f32 %v76, %v92
  %v96 = vadd.f32 %v77, %v93
  %v97 = vadd.f32 %v78, %v94
  %v98 = vld [vmem:[%s0 + $0x4] sm:$0x1]
  %vm99 = vcmp.gt.s32.totalorder %v17, 4
  %v100 = vsel %vm99, %v98, 4294967295
  %v101 = vlaneseq
  %v102 = vshrl.u32 %v101, 7
  %v103 = vsub.s32 0, %v102
  %v104 = vrot.slane %v100, %v103
  %vm105 = vcmp.eq.s32.totalorder %v104, %v19
  %vm106 = vcmp.eq.s32.totalorder %v104, %v20
  %vm107 = vcmp.eq.s32.totalorder %v104, %v21
  %v108 = vsel %vm105, 1, 0
  %v109 = vsel %vm106, 1, 0
  %v110 = vsel %vm107, 1, 0
  %v111 = vcvt.s32.f32 %v108
  %v112 = vcvt.s32.f32 %v109
  %v113 = vcvt.s32.f32 %v110
  %v114 = vadd.f32 %v95, %v111
  %v115 = vadd.f32 %v96, %v112
  %v116 = vadd.f32 %v97, %v113
  %v117 = vld [vmem:[%s0 + $0x5] sm:$0x1]
  %vm118 = vcmp.gt.s32.totalorder %v17, 5
  %v119 = vsel %vm118, %v117, 4294967295
  %v120 = vlaneseq
  %v121 = vshrl.u32 %v120, 7
  %v122 = vsub.s32 0, %v121
  %v123 = vrot.slane %v119, %v122
  %vm124 = vcmp.eq.s32.totalorder %v123, %v19
  %vm125 = vcmp.eq.s32.totalorder %v123, %v20
  %vm126 = vcmp.eq.s32.totalorder %v123, %v21
  %v127 = vsel %vm124, 1, 0
  %v128 = vsel %vm125, 1, 0
  %v129 = vsel %vm126, 1, 0
  %v130 = vcvt.s32.f32 %v127
  %v131 = vcvt.s32.f32 %v128
  %v132 = vcvt.s32.f32 %v129
  %v133 = vadd.f32 %v114, %v130
  %v134 = vadd.f32 %v115, %v131
  %v135 = vadd.f32 %v116, %v132
  %v136 = vld [vmem:[%s0 + $0x6] sm:$0x1]
  %vm137 = vcmp.gt.s32.totalorder %v17, 6
  %v138 = vsel %vm137, %v136, 4294967295
  %v139 = vlaneseq
  %v140 = vshrl.u32 %v139, 7
  %v141 = vsub.s32 0, %v140
  %v142 = vrot.slane %v138, %v141
  %vm143 = vcmp.eq.s32.totalorder %v142, %v19
  %vm144 = vcmp.eq.s32.totalorder %v142, %v20
  %vm145 = vcmp.eq.s32.totalorder %v142, %v21
  %v146 = vsel %vm143, 1, 0
  %v147 = vsel %vm144, 1, 0
  %v148 = vsel %vm145, 1, 0
  %v149 = vcvt.s32.f32 %v146
  %v150 = vcvt.s32.f32 %v147
  %v151 = vcvt.s32.f32 %v148
  %v152 = vadd.f32 %v133, %v149
  %v153 = vadd.f32 %v134, %v150
  %v154 = vadd.f32 %v135, %v151
  %v155 = vld [vmem:[%s0 + $0x7] sm:$0x1]
  %vm156 = vcmp.gt.s32.totalorder %v17, 7
  %v157 = vsel %vm156, %v155, 4294967295
  %v158 = vlaneseq
  %v159 = vshrl.u32 %v158, 7
  %v160 = vsub.s32 0, %v159
  %v161 = vrot.slane %v157, %v160
  %vm162 = vcmp.eq.s32.totalorder %v161, %v19
  %vm163 = vcmp.eq.s32.totalorder %v161, %v20
  %vm164 = vcmp.eq.s32.totalorder %v161, %v21
  %v165 = vsel %vm162, 1, 0
  %v166 = vsel %vm163, 1, 0
  %v167 = vsel %vm164, 1, 0
  %v168 = vcvt.s32.f32 %v165
  %v169 = vcvt.s32.f32 %v166
  %v170 = vcvt.s32.f32 %v167
  %v171 = vadd.f32 %v152, %v168
  %v172 = vadd.f32 %v153, %v169
  %v173 = vadd.f32 %v154, %v170
  %v174 = vcvt.s32.f32 %v17
  %v175 = vrcp.pop %v174
  %v176 = vmul.f32 1.0, %v175
  %v178 = vlaneseq
  %v179 = vshrl.u32 %v178, 7
  %v180 = vsub.s32 0, %v179
  %v181 = vrot.slane %v176, %v180
  %v183 = vmul.f32 %v171, %v181
  %v184 = vmul.f32 %v172, %v181
  %v185 = vmul.f32 %v173, %v181
  %v186 = vld [vmem:[%s2] sm:$0xff]
  %v187 = vld [vmem:[%s2 + $0x8] sm:$0xff]
  %v188 = vld [vmem:[%s2 + $0x10] sm:$0xff]
  %v189 = vld [vmem:[%s2 + $0x18] sm:$0xff]
  %v190 = vld [vmem:[%s3] sm:$0xff]
  %v191 = vld [vmem:[%s3 + $0x8] sm:$0xff]
  %v192 = vld [vmem:[%s3 + $0x10] sm:$0xff]
  %v193 = vld [vmem:[%s3 + $0x18] sm:$0xff]
  %195 = vset.pattern.permute.xlu0 0
  %196 = vperm.xlu0 %195, %v190
  %v197 = vpop.permute.xlu0 %196
  %200 = vset.pattern.permute.xlu0 0
  %201 = vperm.xlu0 %200, %v191
  %v202 = vpop.permute.xlu0 %201
  %205 = vset.pattern.permute.xlu0 0
  %206 = vperm.xlu0 %205, %v192
  %v207 = vpop.permute.xlu0 %206
  %210 = vset.pattern.permute.xlu0 0
  %211 = vperm.xlu0 %210, %v193
  %v212 = vpop.permute.xlu0 %211
  %vm214 = vcmask 162816
  %v216 = vsel %vm214, %v186, 0
  %v219 = vsel %vm214, %v187, 0
  %v222 = vsel %vm214, %v188, 0
  %v225 = vsel %vm214, %v189, 0
  %vm227 = vcmask 1043456
  %v229 = vsel %vm227, %v185, 0
  %231 = vmatprep.subr.mxu0 0.0
  %232 = vmatpush1.msra.mxu0 %v183
  %233 = vmatprep.subr.mxu0 0.0
  %234 = vmatpush1.msra.mxu0 %v184
  %235 = vmatprep.subr.mxu0 0.0
  %236 = vmatpush1.msra.mxu0 %v229
  %237 = vmatprep.subr.mxu0 0.0
  %238 = vmatpush1.msra.mxu0 0.0
  %239 = vmatprep.subr.mxu0 0.0
  %240 = vmatpush1.msra.mxu0 0.0
  %241 = vmatprep.subr.mxu0 0.0
  %242 = vmatpush1.msra.mxu0 0.0
  %243 = vmatprep.subr.mxu0 0.0
  %244 = vmatpush1.msra.mxu0 0.0
  %245 = vmatprep.subr.mxu0 0.0
  %246 = vmatpush1.msra.mxu0 0.0
  %247 = vmatprep.subr.mxu0 0.0
  %248 = vmatpush1.msra.mxu0 0.0
  %249 = vmatprep.subr.mxu0 0.0
  %250 = vmatpush1.msra.mxu0 0.0
  %251 = vmatprep.subr.mxu0 0.0
  %252 = vmatpush1.msra.mxu0 0.0
  %253 = vmatprep.subr.mxu0 0.0
  %254 = vmatpush1.msra.mxu0 0.0
  %255 = vmatprep.subr.mxu0 0.0
  %256 = vmatpush1.msra.mxu0 0.0
  %257 = vmatprep.subr.mxu0 0.0
  %258 = vmatpush1.msra.mxu0 0.0
  %259 = vmatprep.subr.mxu0 0.0
  %260 = vmatpush1.msra.mxu0 0.0
  %261 = vmatprep.subr.mxu0 0.0
  %262 = vmatpush1.msra.mxu0 0.0
  %263 = vmatprep.subr.mxu0 0.0
  %264 = vmatpush1.msra.mxu0 0.0
  %265 = vmatprep.subr.mxu0 0.0
  %266 = vmatpush1.msra.mxu0 0.0
  %267 = vmatprep.subr.mxu0 0.0
  %268 = vmatpush1.msra.mxu0 0.0
  %269 = vmatprep.subr.mxu0 0.0
  %270 = vmatpush1.msra.mxu0 0.0
  %271 = vmatprep.subr.mxu0 0.0
  %272 = vmatpush1.msra.mxu0 0.0
  %273 = vmatprep.subr.mxu0 0.0
  %274 = vmatpush1.msra.mxu0 0.0
  %275 = vmatprep.subr.mxu0 0.0
  %276 = vmatpush1.msra.mxu0 0.0
  %277 = vmatprep.subr.mxu0 0.0
  %278 = vmatpush1.msra.mxu0 0.0
  %279 = vmatprep.subr.mxu0 0.0
  %280 = vmatpush1.msra.mxu0 0.0
  %281 = vmatprep.subr.mxu0 0.0
  %282 = vmatpush1.msra.mxu0 0.0
  %283 = vmatprep.subr.mxu0 0.0
  %284 = vmatpush1.msra.mxu0 0.0
  %285 = vmatprep.subr.mxu0 0.0
  %286 = vmatpush1.msra.mxu0 0.0
  %287 = vmatprep.subr.mxu0 0.0
  %288 = vmatpush1.msra.mxu0 0.0
  %289 = vmatprep.subr.mxu0 0.0
  %290 = vmatpush1.msra.mxu0 0.0
  %291 = vmatprep.subr.mxu0 0.0
  %292 = vmatpush1.msra.mxu0 0.0
  %293 = vmatprep.subr.mxu0 0.0
  %294 = vmatpush1.msra.mxu0 0.0
  %295 = vmatprep.mubr.f32.mxu0 0.0
  %296 = vmatmul.mubr.f32.gmra.mrb[0].mxu0 %v216
  %v297 = vpop.f32.mrb[0].mxu0
  %v298 = vadd.f32 %v197, %v297
  %v299 = vpop.f32.mrb[0].mxu0
  %300 = vmatprep.mubr.f32.mxu0 0.0
  %301 = vmatmul.mubr.f32.gmra.mrb[0].mxu0 %v219
  %v302 = vpop.f32.mrb[0].mxu0
  %v303 = vadd.f32 %v202, %v302
  %v304 = vpop.f32.mrb[0].mxu0
  %305 = vmatprep.mubr.f32.mxu0 0.0
  %306 = vmatmul.mubr.f32.gmra.mrb[0].mxu0 %v222
  %v307 = vpop.f32.mrb[0].mxu0
  %v308 = vadd.f32 %v207, %v307
  %v309 = vpop.f32.mrb[0].mxu0
  %310 = vmatprep.mubr.f32.mxu0 0.0
  %311 = vmatmul.mubr.f32.gmra.mrb[0].mxu0 %v225
  %v312 = vpop.f32.mrb[0].mxu0
  %v313 = vadd.f32 %v212, %v312
  %v314 = vpop.f32.mrb[0].mxu0
  %315 = vdwg.mxu0
  %vm316 = vcmask 64512
  %317 = vst.msk [vmem:[%s4] sm:$0xff] %vm316, %v298
  %318 = vst.msk [vmem:[%s4 + $0x8] sm:$0xff] %vm316, %v303
  %319 = vst.msk [vmem:[%s4 + $0x10] sm:$0xff] %vm316, %v308
  %320 = vst.msk [vmem:[%s4 + $0x18] sm:$0xff] %vm316, %v313
  // Predicated region
  $region18: #{dtn_forward.1} parent=0 // pred_check
    _
  $region19: #{dtn_forward.1} parent=0 // pred_check_branch
    %322 = sbr.rel (0) target = $region21
  $region20: #{dtn_forward.1} parent=0 // pred_region
    _
  $region21: #{dtn_forward.1} parent=0 // pred_fallthru
    _
  // Predicated region
  $region22: #{dtn_forward.1} parent=0 // pred_check
    _
  $region23: #{dtn_forward.1} parent=0 // pred_check_branch
    %324 = sbr.rel (0) target = $region25
  $region24: #{dtn_forward.1} parent=0 // pred_region
    _
  $region25: #{dtn_forward.1} parent=0 // pred_fallthru
    _

</llo_original>
